<compile_context>
chip_gen: v7x
topology: tpu7x:2x2x1
jax: 0.10.0
libtpu: 0.0.40
codegen_flags: <defaults>
</compile_context>

<pallas_src>
import jax
import jax.numpy as jnp
from jax.experimental import pallas as pl
from jax.experimental.pallas import tpu as pltpu


def _round_up(a, m):
    return ((a + m - 1) // m) * m


def _tensorcores_per_chip():
    """Best-effort TensorCores-per-chip detection (v7x / megacore -> 2)."""
    try:
        dev = jax.devices()[0]
        if dev.platform != "tpu":
            return 1
        for attr in ("num_cores", "core_count"):
            v = getattr(dev, attr, None)
            if isinstance(v, int) and v > 0:
                return v
        kind = str(getattr(dev, "device_kind", "")).lower()
        if ("v7" in kind) or ("v5p" in kind) or ("v4" in kind):
            return 2
    except Exception:
        pass
    return 1


def _plan(rows, n_splits, sub, cap):
    """Choose (n_splits, tile_r, steps).

    Every grid block is fully in bounds (tile_r is a multiple of `sub` and the
    grid covers only n_splits*steps*tile_r <= rows rows).  Leftover rows are
    handled by the wrapper in plain JAX, so the kernel never needs masking and
    the inputs are never padded / copied on the host.
    """
    if rows <= cap:                       # whole problem fits in one block
        return 1, rows, 1
    n_splits = max(1, n_splits)
    total_blocks = max(n_splits, pl.cdiv(rows, cap))
    total_blocks = _round_up(total_blocks, n_splits)
    tile_r = ((rows // total_blocks) // sub) * sub
    tile_r = max(tile_r, sub)
    steps = total_blocks // n_splits
    return n_splits, tile_r, steps


def _make_kernel(*, eps, binary_targets, acc_rows, inner_axis):
    """Streaming tile kernel: per-lane loss sums accumulated into o_ref.

    o_ref is the (acc_rows, W) vector accumulator (resident across the inner
    reduction axis): zeroed at the first inner step, accumulated every step
    with pure-VPU adds.  The cross-lane reduce and the per-class weight are
    deferred to the wrapper (weight is a function of the lane index only).
    """

    def kernel(x_ref, y_ref, o_ref):
        step = pl.program_id(inner_axis)

        x = x_ref[...].astype(jnp.float32)
        y = y_ref[...].astype(jnp.float32)

        if binary_targets:
            # Hard {0,1} labels only: one log per element (halves EUP work).
            pos = y > 0.5
            lg = jnp.log(jnp.maximum(jnp.where(pos, x, 1.0 - x), eps))
            loss = jnp.where(pos, lg, x * lg)
        else:
            los_pos = y * jnp.log(jnp.maximum(x, eps))
            los_neg = (1.0 - y) * jnp.log(jnp.maximum(1.0 - x, eps))
            loss = los_pos + x * los_neg       # neg_weight = 1 - (1 - x) = x

        # (tile_r, W) -> (acc_rows, W): reduce over vreg groups with VPU adds
        # (the reshape does not cross the (8, 128) tile boundary -> free).
        part = loss.reshape(-1, acc_rows, loss.shape[-1]).sum(axis=0)

        @pl.when(step == 0)
        def _():
            o_ref[...] = jnp.zeros_like(o_ref)

        o_ref[...] += part.reshape(o_ref.shape)

    return kernel


def weighted_asymmetric_loss(x, y, weight=None, eps=1e-8, *,
                             binary_targets=False, tile_rows_max=None,
                             n_splits=None, buffers=3):
    """Forward of WeightedAsymmetricLoss: -mean_b(mean_c(loss * w)).

    x, y: [B, C] predictions / targets (f32 or bf16).  weight: [C] or None.
    binary_targets=True uses a single-log fast path that is exact only for
    hard {0, 1} labels; keep it False for soft labels.
    """
    assert x.shape == y.shape and x.ndim == 2, "expected [B, C] inputs"
    B, C = x.shape
    N = B * C

    is_bf16 = (x.dtype == jnp.bfloat16) or (y.dtype == jnp.bfloat16)
    sub = 16 if is_bf16 else 8                 # bf16 packs 2 rows per sublane
    if tile_rows_max is None:
        tile_rows_max = 4096 if is_bf16 else 2048   # ~1 MiB data blocks
    cap = max(sub, (int(tile_rows_max) // sub) * sub)

    # Layout: lane-dense [rows, 128] whenever the flatten is a *free* reshape
    # (no pad / no HBM copy).  Otherwise stream the original [B, C]; that path
    # is lane-sparse when 128 % C != 0 or C < 128, but avoids any host-side
    # padding copy.  (A further improvement for e.g. C=9 would pad the class
    # axis up to a divisor of 128 with zero weights.)
    lane_dense = (128 % C == 0) and (N % 128 == 0)
    if lane_dense:
        W, rows = 128, N // 128
        x2, y2 = x.reshape(rows, W), y.reshape(rows, W)
    else:
        W, rows = C, B
        x2, y2 = x, y

    if n_splits is None:
        n_splits = 2 if _tensorcores_per_chip() >= 2 else 1
    n_splits, tile_r, steps = _plan(rows, int(n_splits), sub, cap)
    rows_main = n_splits * steps * tile_r        # rows covered by the grid
    tail_rows = rows - rows_main                 # tiny remainder (plain JAX)
    acc_rows = 8 if tile_r % 8 == 0 else 1
    two_axis = n_splits > 1

    if two_axis:
        grid = (n_splits, steps)
        data_idx = lambda s, i: (s * steps + i, 0)
        out_idx = lambda s, i: (s, 0, 0)
        out_shape = jax.ShapeDtypeStruct((n_splits, acc_rows, W), jnp.float32)
        out_block = (1, acc_rows, W)
        # NOTE: on v7x, if profiling shows both splits on one TensorCore,
        # switch the leading axis to pltpu.CORE_PARALLEL.
        dim_sems = ("parallel", "arbitrary")
    else:
        grid = (steps,)
        data_idx = lambda i: (i, 0)
        out_idx = lambda i: (0, 0)
        out_shape = jax.ShapeDtypeStruct((acc_rows, W), jnp.float32)
        out_block = (acc_rows, W)
        dim_sems = ("arbitrary",)

    spec_kwargs = {}
    if buffers and int(buffers) != 2 and steps >= int(buffers):
        spec_kwargs["pipeline_mode"] = pl.Buffered(int(buffers))
    try:
        data_spec = pl.BlockSpec((tile_r, W), data_idx, **spec_kwargs)
    except TypeError:                      # jax without pipeline_mode support
        data_spec = pl.BlockSpec((tile_r, W), data_idx)

    kernel = _make_kernel(eps=float(eps), binary_targets=bool(binary_targets),
                          acc_rows=acc_rows, inner_axis=len(grid) - 1)

    acc = pl.pallas_call(
        kernel,
        out_shape=out_shape,
        grid=grid,
        in_specs=[data_spec, data_spec],
        out_specs=pl.BlockSpec(out_block, out_idx),
        compiler_params=pltpu.CompilerParams(
            dimension_semantics=dim_sems,
            vmem_limit_bytes=32 * 1024 * 1024),
    )(x2, y2)

    # Per-lane sums (class of lane l is l % C in both layouts).
    per_lane = jnp.sum(acc.reshape(-1, W), axis=0)

    # Tail rows not covered by the grid (< ~one tile per split).
    if tail_rows:
        tx = x2[rows_main:].astype(jnp.float32)
        ty = y2[rows_main:].astype(jnp.float32)
        lp = ty * jnp.log(jnp.maximum(tx, eps))
        ln = (1.0 - ty) * jnp.log(jnp.maximum(1.0 - tx, eps))
        per_lane = per_lane + jnp.sum(lp + tx * ln, axis=0)

    # Deferred per-class weight: pure function of the lane index, so it
    # commutes with all of the row accumulation done above.
    if weight is not None:
        w = jnp.asarray(weight, jnp.float32).reshape(-1)
        per_lane = per_lane * (jnp.tile(w, W // C) if lane_dense else w)

    # mean over classes then mean over batch == sum / (B * C); negate once.
    return -jnp.sum(per_lane) / jnp.float32(N)


def _reference(x, y, weight, eps):
    """Pure-JAX mirror of the PyTorch forward."""
    x = x.astype(jnp.float32)
    y = y.astype(jnp.float32)
    los_pos = y * jnp.log(jnp.maximum(x, eps))
    los_neg = (1.0 - y) * jnp.log(jnp.maximum(1.0 - x, eps))
    loss = los_pos + x * los_neg
    if weight is not None:
        loss = loss * jnp.asarray(weight, jnp.float32).reshape(1, -1)
    return -jnp.mean(jnp.mean(loss, axis=-1))


if __name__ == "__main__":
    key = jax.random.PRNGKey(0)
    kx, ky, kw, k1, k2, k3, k4 = jax.random.split(key, 7)
    eps = 1e-8

    def make_inputs(B, C, ka, kb):
        x = jax.nn.sigmoid(jax.random.normal(ka, (B, C), dtype=jnp.float32))
        y = (jax.random.uniform(kb, (B, C)) > 0.5).astype(jnp.float32)
        return x, y

    def check(out, ref, tol, name):
        out = jax.block_until_ready(out)
        assert jnp.allclose(out, ref, atol=tol, rtol=tol), (name, out, ref)

    # --- Spec-sized case: [B, 8] predictions / binary labels. ---
    B, C = 2, 8
    x, y = make_inputs(B, C, kx, ky)
    weight = jax.random.uniform(kw, (C,), dtype=jnp.float32) + 0.5

    check(weighted_asymmetric_loss(x, y, weight=weight, eps=eps),
          _reference(x, y, weight, eps), 1e-6, "weighted")
    check(weighted_asymmetric_loss(x, y, weight=None, eps=eps),
          _reference(x, y, None, eps), 1e-6, "unweighted")
    # Hard-label single-log fast path (y is binary here, so it must agree).
    check(weighted_asymmetric_loss(x, y, weight=weight, eps=eps,
                                   binary_targets=True),
          _reference(x, y, weight, eps), 1e-6, "binary_fast_path")

    # --- General (non-128-aligned) path + plain-JAX tail, no host pad. ---
    x2a, y2a = make_inputs(2066, C, k1, k2)
    check(weighted_asymmetric_loss(x2a, y2a, weight=weight, eps=eps),
          _reference(x2a, y2a, weight, eps), 1e-5, "general_path_tail")

    # --- Lane-dense path, multi-step pipeline (Buffered) + tail. ---
    x3a, y3a = make_inputs(2064, C, k3, k4)
    check(weighted_asymmetric_loss(x3a, y3a, weight=weight, eps=eps,
                                   tile_rows_max=64),
          _reference(x3a, y3a, weight, eps), 1e-5, "lane_dense_pipelined")

    print("KERNEL_OK")
</pallas_src>

<mosaic_0001>
module attributes {stable_mosaic.version = 11 : i64} {
  func.func @kernel(%arg0: i32, %arg1: memref<2x8xf32, #tpu.memory_space<vmem>>, %arg2: memref<2x8xf32, #tpu.memory_space<vmem>>, %arg3: memref<1x8xf32, #tpu.memory_space<vmem>>) attributes {dimension_semantics = [#tpu.dimension_semantics<arbitrary>], iteration_bounds = array<i64: 1>, scalar_prefetch = 0 : i64, scratch_operands = 0 : i64, tpu.core_type = #tpu.core_type<tc>, window_params = [{transform_indices = @transform_0, window_bounds = array<i64: 2, 8>}, {transform_indices = @transform_1, window_bounds = array<i64: 2, 8>}, {pipeline_mode = #tpu.pipeline_mode<synchronous>, transform_indices = @transform_2, window_bounds = array<i64: 1, 8>}]} {
    %c0 = arith.constant 0 : index
    %c0_0 = arith.constant 0 : index
    %0 = vector.load %arg1[%c0, %c0_0] : memref<2x8xf32, #tpu.memory_space<vmem>>, vector<2x8xf32>
    %c0_1 = arith.constant 0 : index
    %c0_2 = arith.constant 0 : index
    %1 = vector.load %arg2[%c0_1, %c0_2] : memref<2x8xf32, #tpu.memory_space<vmem>>, vector<2x8xf32>
    %cst = arith.constant 9.99999993E-9 : f32
    %2 = vector.broadcast %cst : f32 to vector<2x8xf32>
    %3 = arith.maximumf %0, %2 : vector<2x8xf32>
    %4 = math.log %3 : vector<2x8xf32>
    %5 = arith.mulf %1, %4 : vector<2x8xf32>
    %cst_3 = arith.constant 1.000000e+00 : f32
    %6 = vector.broadcast %cst_3 : f32 to vector<2x8xf32>
    %7 = arith.subf %6, %1 : vector<2x8xf32>
    %cst_4 = arith.constant 1.000000e+00 : f32
    %8 = vector.broadcast %cst_4 : f32 to vector<2x8xf32>
    %9 = arith.subf %8, %0 : vector<2x8xf32>
    %cst_5 = arith.constant 9.99999993E-9 : f32
    %10 = vector.broadcast %cst_5 : f32 to vector<2x8xf32>
    %11 = arith.maximumf %9, %10 : vector<2x8xf32>
    %12 = math.log %11 : vector<2x8xf32>
    %13 = arith.mulf %7, %12 : vector<2x8xf32>
    %14 = arith.mulf %0, %13 : vector<2x8xf32>
    %15 = arith.addf %5, %14 : vector<2x8xf32>
    %16 = vector.shape_cast %15 : vector<2x8xf32> to vector<2x1x8xf32>
    %cst_6 = arith.constant dense<0.000000e+00> : vector<1x8xf32>
    %17 = vector.multi_reduction <add>, %16, %cst_6 [0] : vector<2x1x8xf32> to vector<1x8xf32>
    %c0_i32 = arith.constant 0 : i32
    %18 = arith.cmpi eq, %arg0, %c0_i32 : i32
    %19 = arith.extui %18 : i1 to i32
    %c0_i32_7 = arith.constant 0 : i32
    %20 = arith.cmpi ne, %19, %c0_i32_7 : i32
    scf.if %20 {
      %cst_12 = arith.constant 0.000000e+00 : f32
      %24 = vector.broadcast %cst_12 : f32 to vector<1x8xf32>
      %c0_13 = arith.constant 0 : index
      %c0_14 = arith.constant 0 : index
      %25 = vector.load %arg3[%c0_13, %c0_14] : memref<1x8xf32, #tpu.memory_space<vmem>>, vector<1x8xf32>
      tpu.vector_store %arg3[%c0_13, %c0_14], %24 {strides = array<i32>} : memref<1x8xf32, #tpu.memory_space<vmem>>, vector<1x8xf32>,
    } else {
    }
    %c0_8 = arith.constant 0 : index
    %c0_9 = arith.constant 0 : index
    %21 = vector.load %arg3[%c0_8, %c0_9] : memref<1x8xf32, #tpu.memory_space<vmem>>, vector<1x8xf32>
    %22 = arith.addf %21, %17 : vector<1x8xf32>
    %c0_10 = arith.constant 0 : index
    %c0_11 = arith.constant 0 : index
    %23 = vector.load %arg3[%c0_10, %c0_11] : memref<1x8xf32, #tpu.memory_space<vmem>>, vector<1x8xf32>
    tpu.vector_store %arg3[%c0_10, %c0_11], %22 {strides = array<i32>} : memref<1x8xf32, #tpu.memory_space<vmem>>, vector<1x8xf32>,
    return
  }
  func.func @transform_0(%arg0: i32) -> (i32, i32) {
    %c0_i32 = arith.constant 0 : i32
    %c0_i32_0 = arith.constant 0 : i32
    return %arg0, %c0_i32 : i32, i32
  }
  func.func @transform_1(%arg0: i32) -> (i32, i32) {
    %c0_i32 = arith.constant 0 : i32
    %c0_i32_0 = arith.constant 0 : i32
    return %arg0, %c0_i32 : i32, i32
  }
  func.func @transform_2(%arg0: i32) -> (i32, i32) {
    %c0_i32 = arith.constant 0 : i32
    %c0_i32_0 = arith.constant 0 : i32
    %c0_i32_1 = arith.constant 0 : i32
    return %c0_i32, %c0_i32_0 : i32, i32
  }
}

</mosaic_0001>

<llo_original>
// kernel: tpu_custom_call.1
$region0: #{tpu_custom_call.1}
  #allocation0 [shape = 'u32[]', space=smem, size = 0x4, offset = 0x4, fixed_abs, tag = 'smem constant byte address 0x4 - core index']
  #allocation1 [shape = 'u32[144,128]{1,0:T(1,128)}', space=vmem, size = 0x12000, scoped, tag = 'internal scratch']
  %s0 = inlined_call_operand.hbm [shape: f32[2,8], index: 0, kind: input, shape index: {}]
  %s1 = inlined_call_operand.vmem [shape: f32[2,8], index: 1, kind: input, shape index: {}]
  %s2 = inlined_call_operand.hbm [shape: f32[1,8], index: 2, kind: output, shape index: {}]
  %s3 = sld [smem:[#allocation0]]
  $region26: #{tpu_custom_call.1} parent=0
    _
  %s5 = ssub.s32 1, %s3
  %s6 = scalar_select 0, %s5, %s3
  $region1: #{tpu_custom_call.1} parent=0
    #allocation2 [shape = 'u8[1024]{0}', space=vmem, size = 0x400, scoped, tag = 'input window, operand 0, single buffered']
    #allocation3 [shape = 's32[1]{0}', space=sflag, size = 0x4, scoped, tag = 'scoped memory for tpu_custom_call.1']
    #allocation4 [shape = 's32[1]{0}', space=sflag, size = 0x4, scoped, tag = 'scoped memory for tpu_custom_call.1']
    #allocation5 [shape = 'u8[512]{0}', space=vmem, size = 0x400, scoped, tag = 'output window, operand 0, single buffered']
    %7 = vsyncpa [#allocation3], 0
    %8 = vsyncpa [#allocation4], 0
    // Predicated region
    $region2: #{tpu_custom_call.1} parent=1 // pred_check
      _
    $region3: #{tpu_custom_call.1} parent=1 // pred_check_branch
      %10 = sbr.rel (0) target = $region5
    $region4: #{tpu_custom_call.1} parent=1 // pred_region
      %s12 = ssub.s32 32, 32
      %13 = vsyncadd [#allocation3], %s12
      %s15 = sshll.u32 [#allocation2], 4
      %s16 = int_to_ptr.vmem [resolvable:$true] %s15
      %18 = dma.hbm_to_vmem [thread:$0]  %s0, 32, %s16, [#allocation3]
    $region5: #{tpu_custom_call.1} parent=1 // pred_fallthru
      _
    // Predicated region
    $region6: #{tpu_custom_call.1} parent=1 // pred_check
      _
    $region7: #{tpu_custom_call.1} parent=1 // pred_check_branch
      %20 = sbr.rel (0) target = $region9
    $region8: #{tpu_custom_call.1} parent=1 // pred_region
      _
    $region9: #{tpu_custom_call.1} parent=1 // pred_fallthru
      _
    // Predicated region
    $region10: #{tpu_custom_call.1} parent=1 // pred_check
      _
    $region11: #{tpu_custom_call.1} parent=1 // pred_check_branch
      %22 = sbr.rel (0) target = $region13
    $region12: #{tpu_custom_call.1} parent=1 // pred_region
      %23 = dma.done [#allocation3], 32
    $region13: #{tpu_custom_call.1} parent=1 // pred_fallthru
      _
    %v24 = vld [vmem:[#allocation2] sm:$0x3]
    %v25 = vld [vmem:[%s1] sm:$0x3]
    %v26 = vmax.f32 %v24, 1e-08
    %v27 = vlog2.pop %v26
    %v28 = vmul.f32 %v27, 0.6931472
    %v29 = vmul.f32 %v25, %v28
    %v30 = vsub.f32 1.0, %v25
    %v31 = vsub.f32 1.0, %v24
    %v32 = vmax.f32 %v31, 1e-08
    %v33 = vlog2.pop %v32
    %v34 = vmul.f32 %v33, 0.6931472
    %v35 = vmul.f32 %v30, %v34
    %v36 = vmul.f32 %v24, %v35
    %v37 = vadd.f32 %v29, %v36
    %v40 = vunpack.c.l.s4 1966171168
    %v41 = vunpack.c.0.s8 %v40
    %v42 = vlaneseq
    %v43 = vshrl.u32 %v42, 7
    %v44 = vsub.s32 %v41, %v43
    %v45 = vrot.slane %v37, %v44
    %v46 = vcombine.high %v45, %v45
    %v48 = vunpack.c.l.s4 1966171168
    %v49 = vunpack.c.0.s8 %v48
    %v50 = vlaneseq
    %v51 = vshrl.u32 %v50, 7
    %v52 = vsub.s32 %v49, %v51
    %v53 = vrot.slane %v45, %v52
    %v55 = vunpack.c.l.s4 1966171168
    %v56 = vunpack.c.0.s8 %v55
    %v57 = vlaneseq
    %v58 = vshrl.u32 %v57, 7
    %v59 = vsub.s32 %v56, %v58
    %v60 = vrot.slane %v46, %v59
    %vm63 = vcmask 57344
    %v64 = vsel %vm63, %v53, 0.0
    %v65 = vsel %vm63, %v60, 0.0
    %v66 = vadd.f32 %v64, %v65
    %p67 = scmp.eq.s32.totalorder 0, 0
    // Predicated region
    $region14: #{tpu_custom_call.1} parent=1 // pred_check
      %p68 = pneg %p67
    $region15: #{tpu_custom_call.1} parent=1 // pred_check_branch
      %70 = sbr.rel (%p68) target = $region17
    $region16: #{tpu_custom_call.1} parent=1 // pred_region
      %71 = vst.msk [vmem:[#allocation5] sm:$0x1] %vm63, 0.0
    $region17: #{tpu_custom_call.1} parent=1 // pred_fallthru
      _
    %v72 = vld [vmem:[#allocation5] sm:$0x1]
    %v73 = vadd.f32 %v72, %v66
    %74 = vst.msk [vmem:[#allocation5] sm:$0x1] %vm63, %v73
    // Predicated region
    $region18: #{tpu_custom_call.1} parent=1 // pred_check
      _
    $region19: #{tpu_custom_call.1} parent=1 // pred_check_branch
      %76 = sbr.rel (0) target = $region21
    $region20: #{tpu_custom_call.1} parent=1 // pred_region
      %s78 = ssub.s32 16, 16
      %79 = vsyncadd [#allocation4], %s78
      %s81 = sshll.u32 [#allocation5], 4
      %s82 = int_to_ptr.vmem [resolvable:$true] %s81
      %84 = dma.vmem_to_hbm [thread:$0]  %s82, 16, %s2, [#allocation4]
    $region21: #{tpu_custom_call.1} parent=1 // pred_fallthru
      _
    // Predicated region
    $region22: #{tpu_custom_call.1} parent=1 // pred_check
      _
    $region23: #{tpu_custom_call.1} parent=1 // pred_check_branch
      %86 = sbr.rel (0) target = $region25
    $region24: #{tpu_custom_call.1} parent=1 // pred_region
      %87 = dma.done [#allocation4], 16
    $region25: #{tpu_custom_call.1} parent=1 // pred_fallthru
      _
    %88 = vsyncpa [#allocation3], 1
    %89 = vsyncpa [#allocation4], 1

</llo_original>
